<compile_context>
chip_gen: v5e
topology: v5e:2x2
jax: 0.10.0
libtpu: 0.0.40
codegen_flags: <defaults>
</compile_context>

<pallas_src>
import math

import jax
import jax.numpy as jnp
from jax.experimental import pallas as pl
from jax.experimental.pallas import tpu as pltpu


_LANE_CANDIDATES = (1024, 512, 256, 128)
_SMALL_BYTES = 256 * 1024                 # below this, fused XLA mul wins
_TARGET_BLOCK_BYTES = 4 * 1024 * 1024     # ~4 MiB blocks; 2(in+out)*2(dbuf)=16 MiB


def _scale_kernel(scale_ref, x_ref, o_ref):
    # scale lives in SMEM (scalar slot, free); the VPU multiply rides for free
    # under the vld/vst/DMA slots of this HBM-bound streaming kernel.
    s = scale_ref[0, 0]
    o_ref[...] = (x_ref[...].astype(jnp.float32) * s).astype(o_ref.dtype)


def scale_forward(x, scale, *, donate=False, use_pallas=None):
    """Pallas equivalent of Scale(scale)(x) == x * scale (any input shape)."""
    orig_shape = x.shape
    in_dtype = x.dtype
    # PyTorch promotion: float tensor keeps its dtype; int tensor * 0.5 -> f32.
    out_dtype = in_dtype if jnp.issubdtype(in_dtype, jnp.floating) else jnp.float32

    n = int(x.size)
    itemsize = jnp.dtype(in_dtype).itemsize
    if use_pallas is None:
        use_pallas = n * itemsize >= _SMALL_BYTES
    if n == 0 or not use_pallas:
        # Tiny / empty tensors: kernel launch + plumbing dominate; fused XLA
        # multiply is strictly faster here.
        return (x.astype(jnp.float32) * jnp.asarray(scale, jnp.float32)).astype(out_dtype)

    # ---- pick a lane-dense layout whose reshape is metadata-only ----------
    cols = None
    for c in _LANE_CANDIDATES:
        if n % c == 0:
            cols = c
            break
    pad = 0
    if cols is None:
        cols = 128                        # fallback only: pad the flat tail
        pad = (-n) % cols
    rows = (n + pad) // cols

    # Sublane packing: 8 for 32-bit, 16 for 16-bit, 32 for 8-bit dtypes.
    sublane = max(8, 32 // itemsize)
    target_rows = max(
        sublane, (_TARGET_BLOCK_BYTES // (cols * itemsize)) // sublane * sublane
    )
    if rows <= target_rows:
        rows_blk = rows                   # one block == full array dim (legal)
    else:
        rows_blk = target_rows            # sublane-aligned; ragged last block OK

    # Ensure >= 2 grid steps on non-tiny tensors so v7x can shard the grid
    # across its two TensorCores (no-op on single-TC v5e/v6e).
    if rows >= 2 * sublane and rows * cols * itemsize >= (1 << 20):
        half = pl.cdiv(pl.cdiv(rows, 2), sublane) * sublane
        rows_blk = min(rows_blk, half)

    grid = (pl.cdiv(rows, rows_blk),)

    xf = x.reshape(-1)
    if pad:
        xf = jnp.pad(xf, (0, pad))
    x2 = xf.reshape(rows, cols)

    scale_arr = jnp.asarray(scale, dtype=jnp.float32).reshape(1, 1)

    aliases = {}
    if donate and pad == 0 and out_dtype == in_dtype:
        aliases = {1: 0}                  # x2 is positional input #1 (after scale)

    out2 = pl.pallas_call(
        _scale_kernel,
        out_shape=jax.ShapeDtypeStruct((rows, cols), out_dtype),
        grid=grid,
        in_specs=[
            pl.BlockSpec(memory_space=pltpu.MemorySpace.SMEM),      # scale (1,1)
            pl.BlockSpec((rows_blk, cols), lambda i: (i, 0)),       # x slab
        ],
        out_specs=pl.BlockSpec((rows_blk, cols), lambda i: (i, 0)),
        compiler_params=pltpu.CompilerParams(
            dimension_semantics=("parallel",),        # shard steps across TCs (v7x)
            vmem_limit_bytes=32 * 1024 * 1024,        # required on v5e, safe on all
        ),
        input_output_aliases=aliases,
    )(scale_arr, x2)

    out = out2.reshape(-1)
    if pad:
        out = out[:n]
    return out.reshape(orig_shape)


if __name__ == "__main__":
    key = jax.random.PRNGKey(0)
    # Small NCHW input consistent with the module's usage.
    x = jax.random.normal(key, (2, 4, 16, 16), dtype=jnp.float32)
    scale = 0.5  # plain attribute in the PyTorch module (not a Parameter)

    # Force the Pallas path at this small test size (auto mode would take the
    # fused-XLA fast path for a tensor this tiny).
    out = scale_forward(x, scale, use_pallas=True)
    out = jax.block_until_ready(out)

    ref = x * scale
    assert out.shape == x.shape and out.dtype == x.dtype
    assert jnp.allclose(out, ref, atol=1e-6, rtol=1e-6)

    # Also exercise the auto (small-tensor XLA) path with a traced scale value.
    out_auto = jax.block_until_ready(scale_forward(x, jnp.float32(0.5)))
    assert jnp.allclose(out_auto, ref, atol=1e-6, rtol=1e-6)

    print("KERNEL_OK")
</pallas_src>

<mosaic_0001>
module attributes {stable_mosaic.version = 11 : i64} {
  func.func @_scale_kernel(%arg0: i32, %arg1: memref<1x1xf32, #tpu.memory_space<smem>>, %arg2: memref<2x1024xf32, #tpu.memory_space<vmem>>, %arg3: memref<2x1024xf32, #tpu.memory_space<vmem>>) attributes {dimension_semantics = [#tpu.dimension_semantics<parallel>], iteration_bounds = array<i64: 1>, scalar_prefetch = 0 : i64, scratch_operands = 0 : i64, tpu.core_type = #tpu.core_type<tc>, window_params = [{transform_indices = @transform_0, window_bounds = array<i64: 1, 1>}, {transform_indices = @transform_1, window_bounds = array<i64: 2, 1024>}, {transform_indices = @transform_2, window_bounds = array<i64: 2, 1024>}]} {
    %c0 = arith.constant 0 : index
    %c0_0 = arith.constant 0 : index
    %0 = memref.load %arg1[%c0, %c0_0] : memref<1x1xf32, #tpu.memory_space<smem>>
    %c0_1 = arith.constant 0 : index
    %c0_2 = arith.constant 0 : index
    %1 = vector.load %arg2[%c0_1, %c0_2] : memref<2x1024xf32, #tpu.memory_space<vmem>>, vector<2x1024xf32>
    %2 = vector.broadcast %0 : f32 to vector<2x1024xf32>
    %3 = arith.mulf %1, %2 : vector<2x1024xf32>
    %c0_3 = arith.constant 0 : index
    %c0_4 = arith.constant 0 : index
    %4 = vector.load %arg3[%c0_3, %c0_4] : memref<2x1024xf32, #tpu.memory_space<vmem>>, vector<2x1024xf32>
    tpu.vector_store %arg3[%c0_3, %c0_4], %3 {strides = array<i32>} : memref<2x1024xf32, #tpu.memory_space<vmem>>, vector<2x1024xf32>,
    return
  }
  func.func @transform_0(%arg0: i32) -> (i32, i32) {
    %c0_i32 = arith.constant 0 : i32
    %c0_i32_0 = arith.constant 0 : i32
    %c0_i32_1 = arith.constant 0 : i32
    return %c0_i32, %c0_i32_0 : i32, i32
  }
  func.func @transform_1(%arg0: i32) -> (i32, i32) {
    %c0_i32 = arith.constant 0 : i32
    %c0_i32_0 = arith.constant 0 : i32
    return %arg0, %c0_i32 : i32, i32
  }
  func.func @transform_2(%arg0: i32) -> (i32, i32) {
    %c0_i32 = arith.constant 0 : i32
    %c0_i32_0 = arith.constant 0 : i32
    return %arg0, %c0_i32 : i32, i32
  }
}

</mosaic_0001>

<llo_original>
// kernel: tpu_custom_call.1
$region0: #{tpu_custom_call.1}
  #allocation0 [shape = 'u32[]', space=smem, size = 0x4, offset = 0x4, fixed_abs, tag = 'smem constant byte address 0x4 - core index']
  #allocation1 [shape = 'u32[72,128]{1,0:T(1,128)}', space=vmem, size = 0x9000, scoped, tag = 'internal scratch']
  #allocation2 [shape = 'f32[1,1]{1,0:T(1,128)S(6)}', space=smem, size = 0x200, scoped, tag = 'scoped memory for tpu_custom_call.1']
  %s0 = inlined_call_operand.<no memory space> [shape: f32[1,1], index: 0, kind: input, shape index: {}]
  %s1 = inlined_call_operand.hbm [shape: f32[2,1024], index: 1, kind: input, shape index: {}]
  %s2 = inlined_call_operand.hbm [shape: f32[2,1024], index: 2, kind: output, shape index: {}]
  %s3 = sld [smem:[#allocation0]]
  $region22: #{tpu_custom_call.1} parent=0
    _
  %s5 = ssub.s32 1, %s3
  %s6 = scalar_select 0, %s5, %s3
  %7 = sst [smem:[#allocation2]] %s0
  $region1: #{tpu_custom_call.1} parent=0
    #allocation3 [shape = 'u8[8192]{0}', space=vmem, size = 0x2000, scoped, tag = 'input window, operand 1, single buffered']
    #allocation4 [shape = 's32[1]{0}', space=sflag, size = 0x4, scoped, tag = 'scoped memory for tpu_custom_call.1']
    #allocation5 [shape = 's32[1]{0}', space=sflag, size = 0x4, scoped, tag = 'scoped memory for tpu_custom_call.1']
    #allocation6 [shape = 'u8[8192]{0}', space=vmem, size = 0x2000, scoped, tag = 'output window, operand 0, single buffered']
    %8 = vsyncpa [#allocation4], 0
    %9 = vsyncpa [#allocation5], 0
    // Predicated region
    $region2: #{tpu_custom_call.1} parent=1 // pred_check
      _
    $region3: #{tpu_custom_call.1} parent=1 // pred_check_branch
      %11 = sbr.rel (0) target = $region5
    $region4: #{tpu_custom_call.1} parent=1 // pred_region
      _
    $region5: #{tpu_custom_call.1} parent=1 // pred_fallthru
      _
    // Predicated region
    $region6: #{tpu_custom_call.1} parent=1 // pred_check
      _
    $region7: #{tpu_custom_call.1} parent=1 // pred_check_branch
      %13 = sbr.rel (0) target = $region9
    $region8: #{tpu_custom_call.1} parent=1 // pred_region
      %15 = vsyncadd [#allocation4], 0
      %s17 = sshll.u32 %s1, 4
      %s18 = int_to_ptr.hbm [resolvable:$true] %s17
      %s19 = sshll.u32 [#allocation3], 4
      %s20 = int_to_ptr.vmem [resolvable:$true] %s19
      %22 = dma.hbm_to_vmem [thread:$0]  %s18, 256, %s20, [#allocation4]
    $region9: #{tpu_custom_call.1} parent=1 // pred_fallthru
      _
    // Predicated region
    $region10: #{tpu_custom_call.1} parent=1 // pred_check
      _
    $region11: #{tpu_custom_call.1} parent=1 // pred_check_branch
      %24 = sbr.rel (0) target = $region13
    $region12: #{tpu_custom_call.1} parent=1 // pred_region
      %26 = dma.done [#allocation4], 256
    $region13: #{tpu_custom_call.1} parent=1 // pred_fallthru
      _
    %s27 = sld [smem:[#allocation2]]
    %v28 = vld [vmem:[#allocation3] sm:$0xff]
    %v29 = vld [vmem:[#allocation3 + $0x8] sm:$0xff]
    %v30 = vstv %s27
    %v31 = vmul.f32 %v28, %v30
    %v32 = vmul.f32 %v29, %v30
    %33 = vst [vmem:[#allocation6] sm:$0xff] %v31
    %34 = vst [vmem:[#allocation6 + $0x8] sm:$0xff] %v32
    // Predicated region
    $region14: #{tpu_custom_call.1} parent=1 // pred_check
      _
    $region15: #{tpu_custom_call.1} parent=1 // pred_check_branch
      %36 = sbr.rel (0) target = $region17
    $region16: #{tpu_custom_call.1} parent=1 // pred_region
      %38 = vsyncadd [#allocation5], 0
      %s40 = sshll.u32 [#allocation6], 4
      %s41 = int_to_ptr.vmem [resolvable:$true] %s40
      %s42 = sshll.u32 %s2, 4
      %s43 = int_to_ptr.hbm [resolvable:$true] %s42
      %45 = dma.vmem_to_hbm [thread:$0]  %s41, 256, %s43, [#allocation5]
    $region17: #{tpu_custom_call.1} parent=1 // pred_fallthru
      _
    // Predicated region
    $region18: #{tpu_custom_call.1} parent=1 // pred_check
      _
    $region19: #{tpu_custom_call.1} parent=1 // pred_check_branch
      %47 = sbr.rel (0) target = $region21
    $region20: #{tpu_custom_call.1} parent=1 // pred_region
      %49 = dma.done [#allocation5], 256
    $region21: #{tpu_custom_call.1} parent=1 // pred_fallthru
      _
    %50 = vsyncpa [#allocation4], 1
    %51 = vsyncpa [#allocation5], 1

</llo_original>
